<compile_context>
chip_gen: v5e
topology: v5e:2x2
jax: 0.10.0
libtpu: 0.0.40
codegen_flags: <defaults>
</compile_context>

<pallas_src>
import functools

import jax
import jax.numpy as jnp
from jax import lax
from jax.experimental import pallas as pl
from jax.experimental.pallas import tpu as pltpu

FEAT = 128  # lane-dense padded feature width shared by all layers


def _round_up(x, m):
    return (x + m - 1) // m * m


def _cdiv(a, b):
    return -(-a // b)


def ddpg_forward_kernel(obs_ref, w_ref, b_ref, out_ref, *,
                        obs_pad, state_dim, action_dim):
    """Fused DDPG actor forward on one batch tile.

    obs_ref : (TILE_B, obs_pad)   f32 observations
    w_ref   : (3, FEAT, FEAT)     compute dtype (f32 or bf16), zero-padded weights
    b_ref   : (3, 1, FEAT)        f32 zero-padded biases
    out_ref : (TILE_B, FEAT)      out dtype; lanes [:state_dim]=state,
                                  lanes [state_dim:state_dim+action_dim]=act
    """
    del action_dim  # layout only; padded act lanes are exact zeros
    cdt = w_ref.dtype
    obs = obs_ref[...]

    # representation: state = ReLU(obs @ W0 + b0)   (MXU dot, f32 accumulate)
    state = jnp.dot(obs.astype(cdt), w_ref[0, :obs_pad, :],
                    preferred_element_type=jnp.float32)
    state = jnp.maximum(state + b_ref[0], 0.0)        # f32 element-wise

    # actor hidden: h = ReLU(state @ W1 + b1)
    h = jnp.dot(state.astype(cdt), w_ref[1],
                preferred_element_type=jnp.float32)
    h = jnp.maximum(h + b_ref[1], 0.0)

    # actor output: act = Tanh(h @ W2 + b2)          (EUP tanh)
    act = jnp.dot(h.astype(cdt), w_ref[2],
                  preferred_element_type=jnp.float32)
    act = jnp.tanh(act + b_ref[2])

    # Pack (state | act) into one 128-lane slab: rotate act so its valid lanes
    # land at [state_dim, state_dim+action_dim), then select by lane index.
    act_shifted = pltpu.roll(act, shift=state_dim, axis=1)
    lane = lax.broadcasted_iota(jnp.int32, state.shape, 1)
    packed = jnp.where(lane < state_dim, state, act_shifted)

    # single unmasked, lane-dense 128-wide store
    out_ref[...] = packed.astype(out_ref.dtype)


def pack_params(params, compute_dtype):
    """Pack the 3 layers into one zero-padded weight buffer + one bias buffer."""
    w0, w1, w2 = params["w0"], params["w1"], params["w2"]
    b0, b1, b2 = params["b0"], params["b1"], params["b2"]
    obs_pad = _round_up(w0.shape[0], 8)
    assert obs_pad <= FEAT and w1.shape[0] <= FEAT and w2.shape[0] <= FEAT
    assert w0.shape[1] <= FEAT and w1.shape[1] <= FEAT and w2.shape[1] <= FEAT

    def pad_w(w):
        buf = jnp.zeros((FEAT, FEAT), compute_dtype)
        return buf.at[: w.shape[0], : w.shape[1]].set(w.astype(compute_dtype))

    def pad_b(b):
        b = jnp.reshape(b, (1, -1)).astype(jnp.float32)
        buf = jnp.zeros((1, FEAT), jnp.float32)
        return buf.at[:, : b.shape[1]].set(b)

    w_packed = jnp.stack([pad_w(w0), pad_w(w1), pad_w(w2)])   # (3, 128, 128)
    b_packed = jnp.stack([pad_b(b0), pad_b(b1), pad_b(b2)])   # (3, 1, 128)
    return w_packed, b_packed, obs_pad


@functools.partial(jax.jit,
                   static_argnames=("compute_dtype", "out_dtype", "tile_b",
                                    "core_parallel"))
def ddpg_policy_forward(obs, params, *, compute_dtype=jnp.float32,
                        out_dtype=jnp.float32, tile_b=1024,
                        core_parallel=False):
    """Returns (outputs, act) matching DDPGPolicy.forward. outputs = {'state': ...}.

    The pallas_call and the narrow output slices live in one jit so the slices
    fuse with the kernel output (no extra HBM round-trip).
    """
    batch, obs_dim = obs.shape
    state_dim = params["w0"].shape[1]
    action_dim = params["w2"].shape[1]
    assert state_dim + action_dim <= FEAT, "packed-output path needs state+act <= 128 lanes"

    w_packed, b_packed, obs_pad = pack_params(params, compute_dtype)

    # Batch tiling: sublane granularity follows the output dtype (8 for f32,
    # 16 for bf16).  With core_parallel we also cap the tile so the grid has
    # >= 2 steps and both v7x TensorCores get work.
    sub = max(8, 32 // jnp.dtype(out_dtype).itemsize)
    batch_sub = _round_up(batch, sub)
    min_steps = 2 if core_parallel else 1
    tile_cap = _round_up(_cdiv(batch_sub, min_steps), sub)
    tile_b = max(sub, min(_round_up(tile_b, sub), tile_cap))
    batch_pad = _round_up(batch, tile_b)

    obs_p = jnp.pad(obs.astype(jnp.float32),
                    ((0, batch_pad - batch), (0, obs_pad - obs_dim)))

    grid = (batch_pad // tile_b,)
    w_item = jnp.dtype(compute_dtype).itemsize
    out_item = jnp.dtype(out_dtype).itemsize
    cost = pl.CostEstimate(
        flops=2 * batch_pad * (obs_pad * FEAT + FEAT * FEAT + FEAT * FEAT),
        transcendentals=batch_pad * FEAT,
        bytes_accessed=(obs_p.size * 4 + w_packed.size * w_item
                        + b_packed.size * 4 + batch_pad * FEAT * out_item),
    )
    batch_sem = pltpu.CORE_PARALLEL if core_parallel else "parallel"

    out = pl.pallas_call(
        functools.partial(ddpg_forward_kernel, obs_pad=obs_pad,
                          state_dim=state_dim, action_dim=action_dim),
        out_shape=jax.ShapeDtypeStruct((batch_pad, FEAT), out_dtype),
        grid=grid,
        in_specs=[
            pl.BlockSpec((tile_b, obs_pad), lambda i: (i, 0)),      # streamed obs tile
            pl.BlockSpec((3, FEAT, FEAT), lambda i: (0, 0, 0)),     # resident weights
            pl.BlockSpec((3, 1, FEAT), lambda i: (0, 0, 0)),        # resident biases
        ],
        out_specs=pl.BlockSpec((tile_b, FEAT), lambda i: (i, 0)),
        compiler_params=pltpu.CompilerParams(
            dimension_semantics=(batch_sem,)),
        cost_estimate=cost,
    )(obs_p, w_packed, b_packed)

    # Narrow slices fuse with the kernel output inside this jit.
    outputs = {"state": out[:batch, :state_dim]}
    act = out[:batch, state_dim:state_dim + action_dim]
    return outputs, act


def init_params(key, obs_dim, state_dim, actor_hidden, action_dim):
    """Deterministic synthetic parameter init (fan-in scaled normals)."""
    ks = jax.random.split(key, 3)

    def lin(kw, fan_in, fan_out):
        scale = 1.0 / jnp.sqrt(jnp.float32(fan_in))
        return jax.random.normal(kw, (fan_in, fan_out), jnp.float32) * scale

    return {
        "w0": lin(ks[0], obs_dim, state_dim),
        "b0": jnp.zeros((1, state_dim), jnp.float32),
        "w1": lin(ks[1], state_dim, actor_hidden),
        "b1": jnp.zeros((1, actor_hidden), jnp.float32),
        "w2": lin(ks[2], actor_hidden, action_dim),
        "b2": jnp.zeros((1, action_dim), jnp.float32),
    }


if __name__ == "__main__":
    # Small shapes consistent with the module: flat observations -> MLP actor.
    batch = 8
    obs_dim = 16
    state_dim = 32       # representation.output_shapes['state'][0]
    actor_hidden = 32    # actor_hidden_size = [32]
    action_dim = 4       # action_space.shape[0]

    key = jax.random.PRNGKey(0)
    k_obs, k_par = jax.random.split(key)
    obs = jax.random.normal(k_obs, (batch, obs_dim), jnp.float32)
    params = init_params(k_par, obs_dim, state_dim, actor_hidden, action_dim)

    # Plain-JAX reference of DDPGPolicy.forward semantics.
    state_ref = jnp.maximum(obs @ params["w0"] + params["b0"], 0.0)
    h_ref = jnp.maximum(state_ref @ params["w1"] + params["b1"], 0.0)
    act_ref = jnp.tanh(h_ref @ params["w2"] + params["b2"])

    # Default path: f32 compute, f32 packed output slab — bit-tight check.
    outputs, act = ddpg_policy_forward(obs, params)
    jax.block_until_ready(outputs["state"])
    jax.block_until_ready(act)
    assert outputs["state"].shape == (batch, state_dim)
    assert act.shape == (batch, action_dim)
    assert jnp.allclose(outputs["state"], state_ref, atol=1e-5)
    assert jnp.allclose(act, act_ref, atol=1e-5)

    # Multi-tile path (grid > 1, padded batch rows sliced away).
    batch2 = 20
    obs2 = jax.random.normal(jax.random.PRNGKey(1), (batch2, obs_dim), jnp.float32)
    s2_ref = jnp.maximum(obs2 @ params["w0"] + params["b0"], 0.0)
    a2_ref = jnp.tanh(jnp.maximum(s2_ref @ params["w1"] + params["b1"], 0.0)
                      @ params["w2"] + params["b2"])
    out2, act2 = ddpg_policy_forward(obs2, params, tile_b=8)
    jax.block_until_ready(act2)
    assert out2["state"].shape == (batch2, state_dim)
    assert jnp.allclose(out2["state"], s2_ref, atol=1e-5)
    assert jnp.allclose(act2, a2_ref, atol=1e-5)

    # Optional low-traffic path: bf16 MXU operands + bf16 output slab
    # (f32 accumulation and f32 element-wise kept; ~1e-2-level rounding).
    outputs_bf, act_bf = ddpg_policy_forward(
        obs, params, compute_dtype=jnp.bfloat16, out_dtype=jnp.bfloat16)
    jax.block_until_ready(act_bf)
    assert jnp.allclose(outputs_bf["state"].astype(jnp.float32), state_ref,
                        atol=3e-2, rtol=3e-2)
    assert jnp.allclose(act_bf.astype(jnp.float32), act_ref,
                        atol=3e-2, rtol=3e-2)

    # TODO(synk): Qtarget/Qaction/Qpolicy/soft_update are training-side methods
    # (critic + target nets) and are intentionally not part of forward().
    print("KERNEL_OK")
</pallas_src>

<mosaic_0001>
module attributes {stable_mosaic.version = 11 : i64} {
  func.func @ddpg_forward_kernel(%arg0: i32, %arg1: memref<8x16xf32, #tpu.memory_space<vmem>>, %arg2: memref<3x128x128xf32, #tpu.memory_space<vmem>>, %arg3: memref<3x1x128xf32, #tpu.memory_space<vmem>>, %arg4: memref<8x128xf32, #tpu.memory_space<vmem>>) attributes {dimension_semantics = [#tpu.dimension_semantics<parallel>], iteration_bounds = array<i64: 1>, scalar_prefetch = 0 : i64, scratch_operands = 0 : i64, tpu.core_type = #tpu.core_type<tc>, window_params = [{transform_indices = @transform_0, window_bounds = array<i64: 8, 16>}, {pipeline_mode = #tpu.pipeline_mode<synchronous>, transform_indices = @transform_1, window_bounds = array<i64: 3, 128, 128>}, {pipeline_mode = #tpu.pipeline_mode<synchronous>, transform_indices = @transform_2, window_bounds = array<i64: 3, 1, 128>}, {transform_indices = @transform_3, window_bounds = array<i64: 8, 128>}]} {
    %c0 = arith.constant 0 : index
    %c0_0 = arith.constant 0 : index
    %0 = vector.load %arg1[%c0, %c0_0] : memref<8x16xf32, #tpu.memory_space<vmem>>, vector<8x16xf32>
    %c0_1 = arith.constant 0 : index
    %c0_2 = arith.constant 0 : index
    %c0_3 = arith.constant 0 : index
    %1 = vector.load %arg2[%c0_1, %c0_2, %c0_3] : memref<3x128x128xf32, #tpu.memory_space<vmem>>, vector<1x16x128xf32>
    %2 = vector.shape_cast %1 : vector<1x16x128xf32> to vector<16x128xf32>
    %cst = arith.constant dense<0.000000e+00> : vector<8x128xf32>
    %3 = tpu.matmul %0, %2, %cst {dimension_numbers = #tpu.dot_dimension_numbers<[1], [0], [0], [1], [0, 0, 1, 1], [], []>} : vector<8x16xf32>, vector<16x128xf32>, vector<8x128xf32> -> vector<8x128xf32>
    %c0_4 = arith.constant 0 : index
    %c0_5 = arith.constant 0 : index
    %c0_6 = arith.constant 0 : index
    %4 = vector.load %arg3[%c0_4, %c0_5, %c0_6] : memref<3x1x128xf32, #tpu.memory_space<vmem>>, vector<1x1x128xf32>
    %5 = vector.shape_cast %4 : vector<1x1x128xf32> to vector<1x128xf32>
    %6 = vector.broadcast %5 : vector<1x128xf32> to vector<8x128xf32>
    %7 = arith.addf %3, %6 : vector<8x128xf32>
    %cst_7 = arith.constant 0.000000e+00 : f32
    %8 = vector.broadcast %cst_7 : f32 to vector<8x128xf32>
    %9 = arith.maximumf %7, %8 : vector<8x128xf32>
    %c1 = arith.constant 1 : index
    %c0_8 = arith.constant 0 : index
    %c0_9 = arith.constant 0 : index
    %10 = vector.load %arg2[%c1, %c0_8, %c0_9] : memref<3x128x128xf32, #tpu.memory_space<vmem>>, vector<1x128x128xf32>
    %11 = vector.shape_cast %10 : vector<1x128x128xf32> to vector<128x128xf32>
    %cst_10 = arith.constant dense<0.000000e+00> : vector<8x128xf32>
    %12 = tpu.matmul %9, %11, %cst_10 {dimension_numbers = #tpu.dot_dimension_numbers<[1], [0], [0], [1], [0, 0, 1, 1], [], []>} : vector<8x128xf32>, vector<128x128xf32>, vector<8x128xf32> -> vector<8x128xf32>
    %c1_11 = arith.constant 1 : index
    %c0_12 = arith.constant 0 : index
    %c0_13 = arith.constant 0 : index
    %13 = vector.load %arg3[%c1_11, %c0_12, %c0_13] : memref<3x1x128xf32, #tpu.memory_space<vmem>>, vector<1x1x128xf32>
    %14 = vector.shape_cast %13 : vector<1x1x128xf32> to vector<1x128xf32>
    %15 = vector.broadcast %14 : vector<1x128xf32> to vector<8x128xf32>
    %16 = arith.addf %12, %15 : vector<8x128xf32>
    %cst_14 = arith.constant 0.000000e+00 : f32
    %17 = vector.broadcast %cst_14 : f32 to vector<8x128xf32>
    %18 = arith.maximumf %16, %17 : vector<8x128xf32>
    %c2 = arith.constant 2 : index
    %c0_15 = arith.constant 0 : index
    %c0_16 = arith.constant 0 : index
    %19 = vector.load %arg2[%c2, %c0_15, %c0_16] : memref<3x128x128xf32, #tpu.memory_space<vmem>>, vector<1x128x128xf32>
    %20 = vector.shape_cast %19 : vector<1x128x128xf32> to vector<128x128xf32>
    %cst_17 = arith.constant dense<0.000000e+00> : vector<8x128xf32>
    %21 = tpu.matmul %18, %20, %cst_17 {dimension_numbers = #tpu.dot_dimension_numbers<[1], [0], [0], [1], [0, 0, 1, 1], [], []>} : vector<8x128xf32>, vector<128x128xf32>, vector<8x128xf32> -> vector<8x128xf32>
    %c2_18 = arith.constant 2 : index
    %c0_19 = arith.constant 0 : index
    %c0_20 = arith.constant 0 : index
    %22 = vector.load %arg3[%c2_18, %c0_19, %c0_20] : memref<3x1x128xf32, #tpu.memory_space<vmem>>, vector<1x1x128xf32>
    %23 = vector.shape_cast %22 : vector<1x1x128xf32> to vector<1x128xf32>
    %24 = vector.broadcast %23 : vector<1x128xf32> to vector<8x128xf32>
    %25 = arith.addf %21, %24 : vector<8x128xf32>
    %26 = math.tanh %25 : vector<8x128xf32>
    %c32_i32 = arith.constant 32 : i32
    %27 = tpu.dynamic_rotate %26 by %c32_i32 dim 1 : vector<8x128xf32>, i32 -> vector<8x128xf32>
    %28 = tpu.iota {dimensions = array<i32: 1>} : vector<8x128xi32>
    %c32_i32_21 = arith.constant 32 : i32
    %29 = vector.broadcast %c32_i32_21 : i32 to vector<8x128xi32>
    %30 = arith.cmpi slt, %28, %29 : vector<8x128xi32>
    %31 = arith.select %30, %9, %27 : vector<8x128xi1>, vector<8x128xf32>
    %c0_22 = arith.constant 0 : index
    %c0_23 = arith.constant 0 : index
    %32 = vector.load %arg4[%c0_22, %c0_23] : memref<8x128xf32, #tpu.memory_space<vmem>>, vector<8x128xf32>
    tpu.vector_store %arg4[%c0_22, %c0_23], %31 {strides = array<i32>} : memref<8x128xf32, #tpu.memory_space<vmem>>, vector<8x128xf32>,
    return
  }
  func.func @transform_0(%arg0: i32) -> (i32, i32) {
    %c0_i32 = arith.constant 0 : i32
    %c0_i32_0 = arith.constant 0 : i32
    return %arg0, %c0_i32 : i32, i32
  }
  func.func @transform_1(%arg0: i32) -> (i32, i32, i32) {
    %c0_i32 = arith.constant 0 : i32
    %c0_i32_0 = arith.constant 0 : i32
    %c0_i32_1 = arith.constant 0 : i32
    %c0_i32_2 = arith.constant 0 : i32
    return %c0_i32, %c0_i32_0, %c0_i32_1 : i32, i32, i32
  }
  func.func @transform_2(%arg0: i32) -> (i32, i32, i32) {
    %c0_i32 = arith.constant 0 : i32
    %c0_i32_0 = arith.constant 0 : i32
    %c0_i32_1 = arith.constant 0 : i32
    %c0_i32_2 = arith.constant 0 : i32
    return %c0_i32, %c0_i32_0, %c0_i32_1 : i32, i32, i32
  }
  func.func @transform_3(%arg0: i32) -> (i32, i32) {
    %c0_i32 = arith.constant 0 : i32
    %c0_i32_0 = arith.constant 0 : i32
    return %arg0, %c0_i32 : i32, i32
  }
}

</mosaic_0001>

<llo_original>
// kernel: ddpg_policy_forward.1
$region0: #{ddpg_policy_forward.1}
  #allocation0 [shape = 'u32[]', space=smem, size = 0x4, offset = 0x4, fixed_abs, tag = 'smem constant byte address 0x4 - core index']
  #allocation1 [shape = 'u32[72,128]{1,0:T(1,128)}', space=vmem, size = 0x9000, scoped, tag = 'internal scratch']
  %s0 = inlined_call_operand.vmem [shape: f32[8,16], index: 0, kind: input, shape index: {}]
  %s1 = inlined_call_operand.vmem [shape: f32[3,128,128], index: 1, kind: input, shape index: {}]
  %s2 = inlined_call_operand.vmem [shape: f32[3,1,128], index: 2, kind: input, shape index: {}]
  %s3 = inlined_call_operand.vmem [shape: f32[8,128], index: 3, kind: output, shape index: {}]
  %s4 = sld [smem:[#allocation0]]
  $region22: #{ddpg_policy_forward.1} parent=0
    _
  %s6 = ssub.s32 1, %s4
  %s7 = scalar_select 0, %s6, %s4
  // Predicated region
  $region2: #{ddpg_policy_forward.1} parent=0 // pred_check
    _
  $region3: #{ddpg_policy_forward.1} parent=0 // pred_check_branch
    %9 = sbr.rel (0) target = $region5
  $region4: #{ddpg_policy_forward.1} parent=0 // pred_region
    _
  $region5: #{ddpg_policy_forward.1} parent=0 // pred_fallthru
    _
  // Predicated region
  $region6: #{ddpg_policy_forward.1} parent=0 // pred_check
    _
  $region7: #{ddpg_policy_forward.1} parent=0 // pred_check_branch
    %11 = sbr.rel (0) target = $region9
  $region8: #{ddpg_policy_forward.1} parent=0 // pred_region
    _
  $region9: #{ddpg_policy_forward.1} parent=0 // pred_fallthru
    _
  // Predicated region
  $region10: #{ddpg_policy_forward.1} parent=0 // pred_check
    _
  $region11: #{ddpg_policy_forward.1} parent=0 // pred_check_branch
    %13 = sbr.rel (0) target = $region13
  $region12: #{ddpg_policy_forward.1} parent=0 // pred_region
    _
  $region13: #{ddpg_policy_forward.1} parent=0 // pred_fallthru
    _
  %v14 = vld [vmem:[%s0] sm:$0xff]
  %v15 = vld [vmem:[%s1] sm:$0xff]
  %v16 = vld [vmem:[%s1 + $0x8] sm:$0xff]
  %v17 = vld [vmem:[%s2] sm:$0x1]
  %v19 = vperm.slane %v17, 0
  %vm21 = vcmask 130048
  %v23 = vsel %vm21, %v14, 0
  %25 = vmatpush.msra.mxu0 0.0
  %26 = vmatpush.msra.mxu0 0.0
  %27 = vmatpush.msra.mxu0 0.0
  %28 = vmatpush.msra.mxu0 0.0
  %29 = vmatpush.msra.mxu0 0.0
  %30 = vmatpush.msra.mxu0 0.0
  %31 = vmatpush.msra.mxu0 0.0
  %32 = vmatpush.msra.mxu0 0.0
  %33 = vmatpush.msra.mxu0 0.0
  %34 = vmatpush.msra.mxu0 0.0
  %35 = vmatpush.msra.mxu0 0.0
  %36 = vmatpush.msra.mxu0 0.0
  %37 = vmatpush.msra.mxu0 0.0
  %38 = vmatpush.msra.mxu0 0.0
  %39 = vmatpush.msra.mxu0 %v16
  %40 = vmatpush.msra.mxu0 %v15
  %41 = vmatmul.f32.gmra.mxu0 %v23
  %v42 = vpop.f32.mrf.mxu0
  %v43 = vadd.f32 %v19, %v42
  %44 = vdwg.mxu0
  %v45 = vmax.f32 %v43, 0.0
  %s46 = scalar_lea.vmem %s1, 128
  %v47 = vld [vmem:[%s46] sm:$0xff]
  %v48 = vld [vmem:[%s46 + $0x8] sm:$0xff]
  %v49 = vld [vmem:[%s46 + $0x10] sm:$0xff]
  %v50 = vld [vmem:[%s46 + $0x18] sm:$0xff]
  %v51 = vld [vmem:[%s46 + $0x20] sm:$0xff]
  %v52 = vld [vmem:[%s46 + $0x28] sm:$0xff]
  %v53 = vld [vmem:[%s46 + $0x30] sm:$0xff]
  %v54 = vld [vmem:[%s46 + $0x38] sm:$0xff]
  %v55 = vld [vmem:[%s46 + $0x40] sm:$0xff]
  %v56 = vld [vmem:[%s46 + $0x48] sm:$0xff]
  %v57 = vld [vmem:[%s46 + $0x50] sm:$0xff]
  %v58 = vld [vmem:[%s46 + $0x58] sm:$0xff]
  %v59 = vld [vmem:[%s46 + $0x60] sm:$0xff]
  %v60 = vld [vmem:[%s46 + $0x68] sm:$0xff]
  %v61 = vld [vmem:[%s46 + $0x70] sm:$0xff]
  %v62 = vld [vmem:[%s46 + $0x78] sm:$0xff]
  %s63 = scalar_lea.vmem %s2, 1
  %v64 = vld [vmem:[%s63] sm:$0x1]
  %v66 = vperm.slane %v64, 0
  %68 = vmatpush.msra.mxu0 %v62
  %69 = vmatpush.msra.mxu0 %v61
  %70 = vmatpush.msra.mxu0 %v60
  %71 = vmatpush.msra.mxu0 %v59
  %72 = vmatpush.msra.mxu0 %v58
  %73 = vmatpush.msra.mxu0 %v57
  %74 = vmatpush.msra.mxu0 %v56
  %75 = vmatpush.msra.mxu0 %v55
  %76 = vmatpush.msra.mxu0 %v54
  %77 = vmatpush.msra.mxu0 %v53
  %78 = vmatpush.msra.mxu0 %v52
  %79 = vmatpush.msra.mxu0 %v51
  %80 = vmatpush.msra.mxu0 %v50
  %81 = vmatpush.msra.mxu0 %v49
  %82 = vmatpush.msra.mxu0 %v48
  %83 = vmatpush.msra.mxu0 %v47
  %84 = vmatmul.f32.gmra.mxu0 %v45
  %v85 = vpop.f32.mrf.mxu0
  %v86 = vadd.f32 %v66, %v85
  %87 = vdwg.mxu0
  %v88 = vmax.f32 %v86, 0.0
  %s89 = scalar_lea.vmem %s1, 256
  %v90 = vld [vmem:[%s89] sm:$0xff]
  %v91 = vld [vmem:[%s89 + $0x8] sm:$0xff]
  %v92 = vld [vmem:[%s89 + $0x10] sm:$0xff]
  %v93 = vld [vmem:[%s89 + $0x18] sm:$0xff]
  %v94 = vld [vmem:[%s89 + $0x20] sm:$0xff]
  %v95 = vld [vmem:[%s89 + $0x28] sm:$0xff]
  %v96 = vld [vmem:[%s89 + $0x30] sm:$0xff]
  %v97 = vld [vmem:[%s89 + $0x38] sm:$0xff]
  %v98 = vld [vmem:[%s89 + $0x40] sm:$0xff]
  %v99 = vld [vmem:[%s89 + $0x48] sm:$0xff]
  %v100 = vld [vmem:[%s89 + $0x50] sm:$0xff]
  %v101 = vld [vmem:[%s89 + $0x58] sm:$0xff]
  %v102 = vld [vmem:[%s89 + $0x60] sm:$0xff]
  %v103 = vld [vmem:[%s89 + $0x68] sm:$0xff]
  %v104 = vld [vmem:[%s89 + $0x70] sm:$0xff]
  %v105 = vld [vmem:[%s89 + $0x78] sm:$0xff]
  %s106 = scalar_lea.vmem %s2, 2
  %v107 = vld [vmem:[%s106] sm:$0x1]
  %v109 = vperm.slane %v107, 0
  %111 = vmatpush.msra.mxu0 %v105
  %112 = vmatpush.msra.mxu0 %v104
  %113 = vmatpush.msra.mxu0 %v103
  %114 = vmatpush.msra.mxu0 %v102
  %115 = vmatpush.msra.mxu0 %v101
  %116 = vmatpush.msra.mxu0 %v100
  %117 = vmatpush.msra.mxu0 %v99
  %118 = vmatpush.msra.mxu0 %v98
  %119 = vmatpush.msra.mxu0 %v97
  %120 = vmatpush.msra.mxu0 %v96
  %121 = vmatpush.msra.mxu0 %v95
  %122 = vmatpush.msra.mxu0 %v94
  %123 = vmatpush.msra.mxu0 %v93
  %124 = vmatpush.msra.mxu0 %v92
  %125 = vmatpush.msra.mxu0 %v91
  %126 = vmatpush.msra.mxu0 %v90
  %127 = vmatmul.f32.gmra.mxu0 %v88
  %v128 = vpop.f32.mrf.mxu0
  %v129 = vadd.f32 %v109, %v128
  %130 = vdwg.mxu0
  %v131 = vtanh.pop %v129
  %132 = vrot.lane.b32.xlu0 %v131, 32
  %v133 = vpop.permute.xlu0 %132
  %v134 = vlaneseq
  %v135 = vand.u32 %v134, 127
  %vm136 = vcmp.lt.s32.totalorder %v135, 32
  %v137 = vsel %vm136, %v45, %v133
  %138 = vst [vmem:[%s3] sm:$0xff] %v137
  // Predicated region
  $region14: #{ddpg_policy_forward.1} parent=0 // pred_check
    _
  $region15: #{ddpg_policy_forward.1} parent=0 // pred_check_branch
    %140 = sbr.rel (0) target = $region17
  $region16: #{ddpg_policy_forward.1} parent=0 // pred_region
    _
  $region17: #{ddpg_policy_forward.1} parent=0 // pred_fallthru
    _
  // Predicated region
  $region18: #{ddpg_policy_forward.1} parent=0 // pred_check
    _
  $region19: #{ddpg_policy_forward.1} parent=0 // pred_check_branch
    %142 = sbr.rel (0) target = $region21
  $region20: #{ddpg_policy_forward.1} parent=0 // pred_region
    _
  $region21: #{ddpg_policy_forward.1} parent=0 // pred_fallthru
    _

</llo_original>
